<compile_context>
chip_gen: v7x
topology: tpu7x:2x2x1
jax: 0.10.0
libtpu: 0.0.40
codegen_flags: <defaults>
</compile_context>

<pallas_src>
import jax
import jax.numpy as jnp
from jax import lax
from jax.experimental import pallas as pl
from jax.experimental.pallas import tpu as pltpu

LANES = 128  # TPU vreg lane width


def _round_up(x, m):
    return (x + m - 1) // m * m


def basic_block_kernel(xpad_ref, w1_ref, b1_ref, w2_ref, b2_ref, out_ref,
                       hpad_ref):
    """One batch element per grid step.

    xpad_ref : (1, L+2, C) bf16  input, zero-padded along length (padding=1)
    w1_ref   : (3, C, C)   bf16  conv1 weight * BN1 scale, layout (k, Cin, Cout)
    b1_ref   : (1, C)      f32   folded BN1 shift
    w2_ref   : (3, C, C)   bf16  conv2 weight * BN2 scale
    b2_ref   : (1, C)      f32   folded BN2 shift
    out_ref  : (1, L, C)   f32
    hpad_ref : (L+2, C)    bf16  VMEM scratch: zero-padded relu(bn1(conv1(x)))
    """
    L = out_ref.shape[1]
    C = out_ref.shape[2]

    # Shifted views of the padded input: tap k uses rows [k, k+L).
    x0 = xpad_ref[0, pl.ds(0, L), :]
    x1 = xpad_ref[0, pl.ds(1, L), :]      # == original (unconvolved) input
    x2 = xpad_ref[0, pl.ds(2, L), :]

    # ---- conv1 * bn1-scale : three MXU matmuls, f32 accumulation ----
    h = jnp.dot(x0, w1_ref[0], preferred_element_type=jnp.float32)
    h = h + jnp.dot(x1, w1_ref[1], preferred_element_type=jnp.float32)
    h = h + jnp.dot(x2, w1_ref[2], preferred_element_type=jnp.float32)

    # ---- bn1 shift + relu ----
    h = jnp.maximum(h + b1_ref[...], 0.0)
    hb = h.astype(jnp.bfloat16)

    # ---- conv2 zero-padding via persistent VMEM scratch (no concatenate) ----
    zrow = jnp.zeros((1, C), hpad_ref.dtype)
    hpad_ref[pl.ds(0, 1), :] = zrow
    hpad_ref[pl.ds(L + 1, 1), :] = zrow
    hpad_ref[pl.ds(1, L), :] = hb

    # ---- conv2 * bn2-scale ----
    o = jnp.dot(hb, w2_ref[1], preferred_element_type=jnp.float32)  # middle tap
    o = o + jnp.dot(hpad_ref[pl.ds(0, L), :], w2_ref[0],
                    preferred_element_type=jnp.float32)
    o = o + jnp.dot(hpad_ref[pl.ds(2, L), :], w2_ref[2],
                    preferred_element_type=jnp.float32)

    # ---- bn2 shift + residual + relu ----
    o = o + b2_ref[...] + x1.astype(jnp.float32)
    out_ref[0] = jnp.maximum(o, 0.0).astype(out_ref.dtype)


def basic_block_pallas(x_ncl, w1_oik, w2_oik,
                       g1, be1, rm1, rv1, g2, be2, rm2, rv2, eps=1e-5):
    """x_ncl: (N, C, L) float32 -- PyTorch Conv1d layout."""
    N, C, L = x_ncl.shape
    Cp = _round_up(C, LANES)  # lane-dense channel count

    # Fold eval-mode BatchNorm1d: y = conv(x) * s + b,  s = g / sqrt(rv + eps).
    s1 = g1 / jnp.sqrt(rv1 + eps)
    s2 = g2 / jnp.sqrt(rv2 + eps)
    b1 = be1 - rm1 * s1
    b2 = be2 - rm2 * s2

    def fold_weight(w_oik, s):
        # (Cout, Cin, K) -> (K, Cin, Cout), scale along Cout, pad to Cp, bf16.
        w = jnp.transpose(w_oik, (2, 1, 0)).astype(jnp.float32) * s[None, None, :]
        w = jnp.pad(w, ((0, 0), (0, Cp - C), (0, Cp - C)))
        return w.astype(jnp.bfloat16)

    w1 = fold_weight(w1_oik, s1)
    w2 = fold_weight(w2_oik, s2)
    b1p = jnp.pad(b1, (0, Cp - C)).reshape(1, Cp).astype(jnp.float32)
    b2p = jnp.pad(b2, (0, Cp - C)).reshape(1, Cp).astype(jnp.float32)

    # Layout glue: NCW -> NLC, pad L by 1 each side, pad C to Cp, cast bf16.
    x_nlc = jnp.transpose(x_ncl, (0, 2, 1)).astype(jnp.float32)
    x_pad = jnp.pad(x_nlc, ((0, 0), (1, 1), (0, Cp - C))).astype(jnp.bfloat16)

    # TODO(synk): for very long sequences, tile the L axis with 2-row halo
    # windows (pl.Element offsets or manual DMA) instead of one whole-L block
    # per batch element, to bound VMEM on v7x (64 MiB) and feed both cores.
    out_nlc = pl.pallas_call(
        basic_block_kernel,
        out_shape=jax.ShapeDtypeStruct((N, L, Cp), jnp.float32),
        grid_spec=pltpu.PrefetchScalarGridSpec(
            num_scalar_prefetch=0,
            grid=(N,),
            in_specs=[
                pl.BlockSpec((1, L + 2, Cp), lambda n: (n, 0, 0)),   # x_pad
                pl.BlockSpec((3, Cp, Cp), lambda n: (0, 0, 0)),      # w1 * s1
                pl.BlockSpec((1, Cp), lambda n: (0, 0)),             # b1
                pl.BlockSpec((3, Cp, Cp), lambda n: (0, 0, 0)),      # w2 * s2
                pl.BlockSpec((1, Cp), lambda n: (0, 0)),             # b2
            ],
            out_specs=pl.BlockSpec((1, L, Cp), lambda n: (n, 0, 0)),
            scratch_shapes=[pltpu.VMEM((L + 2, Cp), jnp.bfloat16)],
        ),
        compiler_params=pltpu.CompilerParams(
            dimension_semantics=("parallel",),
            vmem_limit_bytes=32 * 1024 * 1024,
        ),
    )(x_pad, w1, b1p, w2, b2p)

    # Back to PyTorch layout (N, C, L), drop the channel padding.
    return jnp.transpose(out_nlc[:, :, :C], (0, 2, 1))


def basic_block_reference(x_ncl, w1_oik, w2_oik,
                          g1, be1, rm1, rv1, g2, be2, rm2, rv2, eps=1e-5):
    """Pure-JAX f32 reference matching the PyTorch forward (eval-mode BN)."""
    dn = lax.conv_dimension_numbers(x_ncl.shape, w1_oik.shape,
                                    ("NCH", "OIH", "NCH"))

    def bn(h, g, be, rm, rv):
        g = g[None, :, None]; be = be[None, :, None]
        rm = rm[None, :, None]; rv = rv[None, :, None]
        return (h - rm) / jnp.sqrt(rv + eps) * g + be

    out = lax.conv_general_dilated(x_ncl, w1_oik, (1,), [(1, 1)],
                                   dimension_numbers=dn)
    out = jnp.maximum(bn(out, g1, be1, rm1, rv1), 0.0)
    out = lax.conv_general_dilated(out, w2_oik, (1,), [(1, 1)],
                                   dimension_numbers=dn)
    out = bn(out, g2, be2, rm2, rv2)
    out = out + x_ncl
    return jnp.maximum(out, 0.0)


if __name__ == "__main__":
    # Small shapes consistent with the module: inplanes = planes = C,
    # stride=1, downsample=None (so the residual add is well-defined).
    N, C, L = 2, 4, 16

    key = jax.random.PRNGKey(0)
    ks = jax.random.split(key, 12)

    x = jax.random.normal(ks[0], (N, C, L), jnp.float32)

    # Conv1d weights: (out_channels, in_channels, kernel_size=3), no bias.
    w1 = jax.random.normal(ks[1], (C, C, 3), jnp.float32) * 0.2
    w2 = jax.random.normal(ks[2], (C, C, 3), jnp.float32) * 0.2

    # BatchNorm params / running stats (eval mode).
    g1 = 1.0 + 0.1 * jax.random.normal(ks[3], (C,), jnp.float32)
    be1 = 0.1 * jax.random.normal(ks[4], (C,), jnp.float32)
    rm1 = 0.1 * jax.random.normal(ks[5], (C,), jnp.float32)
    rv1 = 1.0 + 0.1 * jax.random.uniform(ks[6], (C,), jnp.float32)
    g2 = 1.0 + 0.1 * jax.random.normal(ks[7], (C,), jnp.float32)
    be2 = 0.1 * jax.random.normal(ks[8], (C,), jnp.float32)
    rm2 = 0.1 * jax.random.normal(ks[9], (C,), jnp.float32)
    rv2 = 1.0 + 0.1 * jax.random.uniform(ks[10], (C,), jnp.float32)

    out = basic_block_pallas(x, w1, w2, g1, be1, rm1, rv1, g2, be2, rm2, rv2)
    out = jax.block_until_ready(out)

    ref = basic_block_reference(x, w1, w2, g1, be1, rm1, rv1, g2, be2, rm2, rv2)
    ref = jax.block_until_ready(ref)

    assert out.shape == (N, C, L)
    # bf16 MXU operands (f32 accumulation) vs. the all-f32 reference.
    assert jnp.allclose(out, ref, atol=5e-2, rtol=5e-2), "mismatch vs reference"

    print("KERNEL_OK")
</pallas_src>

<mosaic_0001>
module attributes {stable_mosaic.version = 11 : i64} {
  func.func @basic_block_kernel(%arg0: i32, %arg1: memref<1x18x128xbf16, #tpu.memory_space<vmem>>, %arg2: memref<3x128x128xbf16, #tpu.memory_space<vmem>>, %arg3: memref<1x128xf32, #tpu.memory_space<vmem>>, %arg4: memref<3x128x128xbf16, #tpu.memory_space<vmem>>, %arg5: memref<1x128xf32, #tpu.memory_space<vmem>>, %arg6: memref<1x16x128xf32, #tpu.memory_space<vmem>>, %arg7: memref<18x128xbf16, #tpu.memory_space<vmem>>) attributes {dimension_semantics = [#tpu.dimension_semantics<parallel>], iteration_bounds = array<i64: 2>, scalar_prefetch = 0 : i64, scratch_operands = 1 : i64, tpu.core_type = #tpu.core_type<tc>, window_params = [{transform_indices = @transform_0, window_bounds = array<i64: 1, 18, 128>}, {pipeline_mode = #tpu.pipeline_mode<synchronous>, transform_indices = @transform_1, window_bounds = array<i64: 3, 128, 128>}, {pipeline_mode = #tpu.pipeline_mode<synchronous>, transform_indices = @transform_2, window_bounds = array<i64: 1, 128>}, {pipeline_mode = #tpu.pipeline_mode<synchronous>, transform_indices = @transform_3, window_bounds = array<i64: 3, 128, 128>}, {pipeline_mode = #tpu.pipeline_mode<synchronous>, transform_indices = @transform_4, window_bounds = array<i64: 1, 128>}, {transform_indices = @transform_5, window_bounds = array<i64: 1, 16, 128>}]} {
    %c0 = arith.constant 0 : index
    %c0_0 = arith.constant 0 : index
    %c0_1 = arith.constant 0 : index
    %0 = vector.load %arg1[%c0, %c0_0, %c0_1] : memref<1x18x128xbf16, #tpu.memory_space<vmem>>, vector<1x16x128xbf16>
    %1 = vector.shape_cast %0 : vector<1x16x128xbf16> to vector<16x128xbf16>
    %c0_2 = arith.constant 0 : index
    %c1 = arith.constant 1 : index
    %c0_3 = arith.constant 0 : index
    %2 = vector.load %arg1[%c0_2, %c1, %c0_3] : memref<1x18x128xbf16, #tpu.memory_space<vmem>>, vector<1x16x128xbf16>
    %3 = vector.shape_cast %2 : vector<1x16x128xbf16> to vector<16x128xbf16>
    %c0_4 = arith.constant 0 : index
    %c2 = arith.constant 2 : index
    %c0_5 = arith.constant 0 : index
    %4 = vector.load %arg1[%c0_4, %c2, %c0_5] : memref<1x18x128xbf16, #tpu.memory_space<vmem>>, vector<1x16x128xbf16>
    %5 = vector.shape_cast %4 : vector<1x16x128xbf16> to vector<16x128xbf16>
    %c0_6 = arith.constant 0 : index
    %c0_7 = arith.constant 0 : index
    %c0_8 = arith.constant 0 : index
    %6 = vector.load %arg2[%c0_6, %c0_7, %c0_8] : memref<3x128x128xbf16, #tpu.memory_space<vmem>>, vector<1x128x128xbf16>
    %7 = vector.shape_cast %6 : vector<1x128x128xbf16> to vector<128x128xbf16>
    %cst = arith.constant dense<0.000000e+00> : vector<16x128xf32>
    %8 = tpu.matmul %1, %7, %cst {dimension_numbers = #tpu.dot_dimension_numbers<[1], [0], [0], [1], [0, 0, 1, 1], [], []>} : vector<16x128xbf16>, vector<128x128xbf16>, vector<16x128xf32> -> vector<16x128xf32>
    %c1_9 = arith.constant 1 : index
    %c0_10 = arith.constant 0 : index
    %c0_11 = arith.constant 0 : index
    %9 = vector.load %arg2[%c1_9, %c0_10, %c0_11] : memref<3x128x128xbf16, #tpu.memory_space<vmem>>, vector<1x128x128xbf16>
    %10 = vector.shape_cast %9 : vector<1x128x128xbf16> to vector<128x128xbf16>
    %cst_12 = arith.constant dense<0.000000e+00> : vector<16x128xf32>
    %11 = tpu.matmul %3, %10, %cst_12 {dimension_numbers = #tpu.dot_dimension_numbers<[1], [0], [0], [1], [0, 0, 1, 1], [], []>} : vector<16x128xbf16>, vector<128x128xbf16>, vector<16x128xf32> -> vector<16x128xf32>
    %12 = arith.addf %8, %11 : vector<16x128xf32>
    %c2_13 = arith.constant 2 : index
    %c0_14 = arith.constant 0 : index
    %c0_15 = arith.constant 0 : index
    %13 = vector.load %arg2[%c2_13, %c0_14, %c0_15] : memref<3x128x128xbf16, #tpu.memory_space<vmem>>, vector<1x128x128xbf16>
    %14 = vector.shape_cast %13 : vector<1x128x128xbf16> to vector<128x128xbf16>
    %cst_16 = arith.constant dense<0.000000e+00> : vector<16x128xf32>
    %15 = tpu.matmul %5, %14, %cst_16 {dimension_numbers = #tpu.dot_dimension_numbers<[1], [0], [0], [1], [0, 0, 1, 1], [], []>} : vector<16x128xbf16>, vector<128x128xbf16>, vector<16x128xf32> -> vector<16x128xf32>
    %16 = arith.addf %12, %15 : vector<16x128xf32>
    %c0_17 = arith.constant 0 : index
    %c0_18 = arith.constant 0 : index
    %17 = vector.load %arg3[%c0_17, %c0_18] : memref<1x128xf32, #tpu.memory_space<vmem>>, vector<1x128xf32>
    %18 = vector.broadcast %17 : vector<1x128xf32> to vector<16x128xf32>
    %19 = arith.addf %16, %18 : vector<16x128xf32>
    %cst_19 = arith.constant 0.000000e+00 : f32
    %20 = vector.broadcast %cst_19 : f32 to vector<16x128xf32>
    %21 = arith.maximumf %19, %20 : vector<16x128xf32>
    %22 = arith.truncf %21 : vector<16x128xf32> to vector<16x128xbf16>
    %cst_20 = arith.constant 0.000000e+00 : bf16
    %23 = vector.broadcast %cst_20 : bf16 to vector<1x128xbf16>
    %c0_21 = arith.constant 0 : index
    %c0_22 = arith.constant 0 : index
    %24 = vector.load %arg7[%c0_21, %c0_22] : memref<18x128xbf16, #tpu.memory_space<vmem>>, vector<1x128xbf16>
    tpu.vector_store %arg7[%c0_21, %c0_22], %23 {strides = array<i32>} : memref<18x128xbf16, #tpu.memory_space<vmem>>, vector<1x128xbf16>,
    %c17 = arith.constant 17 : index
    %c0_23 = arith.constant 0 : index
    %25 = vector.load %arg7[%c17, %c0_23] : memref<18x128xbf16, #tpu.memory_space<vmem>>, vector<1x128xbf16>
    tpu.vector_store %arg7[%c17, %c0_23], %23 {strides = array<i32>} : memref<18x128xbf16, #tpu.memory_space<vmem>>, vector<1x128xbf16>,
    %c1_24 = arith.constant 1 : index
    %c0_25 = arith.constant 0 : index
    %26 = vector.load %arg7[%c1_24, %c0_25] : memref<18x128xbf16, #tpu.memory_space<vmem>>, vector<16x128xbf16>
    tpu.vector_store %arg7[%c1_24, %c0_25], %22 {strides = array<i32>} : memref<18x128xbf16, #tpu.memory_space<vmem>>, vector<16x128xbf16>,
    %c1_26 = arith.constant 1 : index
    %c0_27 = arith.constant 0 : index
    %c0_28 = arith.constant 0 : index
    %27 = vector.load %arg4[%c1_26, %c0_27, %c0_28] : memref<3x128x128xbf16, #tpu.memory_space<vmem>>, vector<1x128x128xbf16>
    %28 = vector.shape_cast %27 : vector<1x128x128xbf16> to vector<128x128xbf16>
    %cst_29 = arith.constant dense<0.000000e+00> : vector<16x128xf32>
    %29 = tpu.matmul %22, %28, %cst_29 {dimension_numbers = #tpu.dot_dimension_numbers<[1], [0], [0], [1], [0, 0, 1, 1], [], []>} : vector<16x128xbf16>, vector<128x128xbf16>, vector<16x128xf32> -> vector<16x128xf32>
    %c0_30 = arith.constant 0 : index
    %c0_31 = arith.constant 0 : index
    %30 = vector.load %arg7[%c0_30, %c0_31] : memref<18x128xbf16, #tpu.memory_space<vmem>>, vector<16x128xbf16>
    %c0_32 = arith.constant 0 : index
    %c0_33 = arith.constant 0 : index
    %c0_34 = arith.constant 0 : index
    %31 = vector.load %arg4[%c0_32, %c0_33, %c0_34] : memref<3x128x128xbf16, #tpu.memory_space<vmem>>, vector<1x128x128xbf16>
    %32 = vector.shape_cast %31 : vector<1x128x128xbf16> to vector<128x128xbf16>
    %cst_35 = arith.constant dense<0.000000e+00> : vector<16x128xf32>
    %33 = tpu.matmul %30, %32, %cst_35 {dimension_numbers = #tpu.dot_dimension_numbers<[1], [0], [0], [1], [0, 0, 1, 1], [], []>} : vector<16x128xbf16>, vector<128x128xbf16>, vector<16x128xf32> -> vector<16x128xf32>
    %34 = arith.addf %29, %33 : vector<16x128xf32>
    %c2_36 = arith.constant 2 : index
    %c0_37 = arith.constant 0 : index
    %35 = vector.load %arg7[%c2_36, %c0_37] : memref<18x128xbf16, #tpu.memory_space<vmem>>, vector<16x128xbf16>
    %c2_38 = arith.constant 2 : index
    %c0_39 = arith.constant 0 : index
    %c0_40 = arith.constant 0 : index
    %36 = vector.load %arg4[%c2_38, %c0_39, %c0_40] : memref<3x128x128xbf16, #tpu.memory_space<vmem>>, vector<1x128x128xbf16>
    %37 = vector.shape_cast %36 : vector<1x128x128xbf16> to vector<128x128xbf16>
    %cst_41 = arith.constant dense<0.000000e+00> : vector<16x128xf32>
    %38 = tpu.matmul %35, %37, %cst_41 {dimension_numbers = #tpu.dot_dimension_numbers<[1], [0], [0], [1], [0, 0, 1, 1], [], []>} : vector<16x128xbf16>, vector<128x128xbf16>, vector<16x128xf32> -> vector<16x128xf32>
    %39 = arith.addf %34, %38 : vector<16x128xf32>
    %c0_42 = arith.constant 0 : index
    %c0_43 = arith.constant 0 : index
    %40 = vector.load %arg5[%c0_42, %c0_43] : memref<1x128xf32, #tpu.memory_space<vmem>>, vector<1x128xf32>
    %41 = vector.broadcast %40 : vector<1x128xf32> to vector<16x128xf32>
    %42 = arith.addf %39, %41 : vector<16x128xf32>
    %43 = arith.extf %3 : vector<16x128xbf16> to vector<16x128xf32>
    %44 = arith.addf %42, %43 : vector<16x128xf32>
    %cst_44 = arith.constant 0.000000e+00 : f32
    %45 = vector.broadcast %cst_44 : f32 to vector<16x128xf32>
    %46 = arith.maximumf %44, %45 : vector<16x128xf32>
    %c0_45 = arith.constant 0 : index
    %c0_46 = arith.constant 0 : index
    %c0_47 = arith.constant 0 : index
    %47 = vector.load %arg6[%c0_45, %c0_46, %c0_47] : memref<1x16x128xf32, #tpu.memory_space<vmem>>, vector<1x16x128xf32>
    %48 = vector.shape_cast %47 : vector<1x16x128xf32> to vector<16x128xf32>
    %49 = vector.shape_cast %46 : vector<16x128xf32> to vector<1x16x128xf32>
    tpu.vector_store %arg6[%c0_45, %c0_46, %c0_47], %49 {strides = array<i32>} : memref<1x16x128xf32, #tpu.memory_space<vmem>>, vector<1x16x128xf32>,
    return
  }
  func.func @transform_0(%arg0: i32) -> (i32, i32, i32) {
    %c0_i32 = arith.constant 0 : i32
    %c0_i32_0 = arith.constant 0 : i32
    %c0_i32_1 = arith.constant 0 : i32
    return %arg0, %c0_i32, %c0_i32_0 : i32, i32, i32
  }
  func.func @transform_1(%arg0: i32) -> (i32, i32, i32) {
    %c0_i32 = arith.constant 0 : i32
    %c0_i32_0 = arith.constant 0 : i32
    %c0_i32_1 = arith.constant 0 : i32
    %c0_i32_2 = arith.constant 0 : i32
    return %c0_i32, %c0_i32_0, %c0_i32_1 : i32, i32, i32
  }
  func.func @transform_2(%arg0: i32) -> (i32, i32) {
    %c0_i32 = arith.constant 0 : i32
    %c0_i32_0 = arith.constant 0 : i32
    %c0_i32_1 = arith.constant 0 : i32
    return %c0_i32, %c0_i32_0 : i32, i32
  }
  func.func @transform_3(%arg0: i32) -> (i32, i32, i32) {
    %c0_i32 = arith.constant 0 : i32
    %c0_i32_0 = arith.constant 0 : i32
    %c0_i32_1 = arith.constant 0 : i32
    %c0_i32_2 = arith.constant 0 : i32
    return %c0_i32, %c0_i32_0, %c0_i32_1 : i32, i32, i32
  }
  func.func @transform_4(%arg0: i32) -> (i32, i32) {
    %c0_i32 = arith.constant 0 : i32
    %c0_i32_0 = arith.constant 0 : i32
    %c0_i32_1 = arith.constant 0 : i32
    return %c0_i32, %c0_i32_0 : i32, i32
  }
  func.func @transform_5(%arg0: i32) -> (i32, i32, i32) {
    %c0_i32 = arith.constant 0 : i32
    %c0_i32_0 = arith.constant 0 : i32
    %c0_i32_1 = arith.constant 0 : i32
    return %arg0, %c0_i32, %c0_i32_0 : i32, i32, i32
  }
}

</mosaic_0001>

<llo_original>
// kernel: tpu_custom_call.1
$region0: #{tpu_custom_call.1}
  #allocation0 [shape = 'u32[]', space=smem, size = 0x4, offset = 0x4, fixed_abs, tag = 'smem constant byte address 0x4 - core index']
  #allocation1 [shape = 'u32[144,128]{1,0:T(1,128)}', space=vmem, size = 0x12000, scoped, tag = 'internal scratch']
  #allocation2 [shape = 'bf16[18,128]{1,0:T(8,128)(2,1)}', space=vmem, size = 0x1800, scoped, tag = 'scratch operand']
  %s0 = inlined_call_operand.vmem [shape: bf16[2,18,128], index: 0, kind: input, shape index: {}]
  %s1 = inlined_call_operand.hbm [shape: bf16[3,128,128], index: 1, kind: input, shape index: {}]
  %s2 = inlined_call_operand.vmem [shape: f32[1,128], index: 2, kind: input, shape index: {}]
  %s3 = inlined_call_operand.hbm [shape: bf16[3,128,128], index: 3, kind: input, shape index: {}]
  %s4 = inlined_call_operand.vmem [shape: f32[1,128], index: 4, kind: input, shape index: {}]
  %s5 = inlined_call_operand.hbm [shape: f32[2,16,128], index: 5, kind: output, shape index: {}]
  %s6 = sld [smem:[#allocation0]]
  $region61: #{tpu_custom_call.1} parent=0
    _
  %s8 = ssub.s32 1, %s6
  %s9 = scalar_select 0, %s8, %s6
  $region1: #{tpu_custom_call.1} parent=0
    #allocation3 [shape = 'u8[98304]{0}', space=vmem, size = 0x18000, scoped, tag = 'input window, operand 1, single buffered']
    #allocation4 [shape = 's32[2]{0}', space=sflag, size = 0x8, scoped, tag = 'scoped memory for tpu_custom_call.1']
    #allocation5 [shape = 's32[2]{0}', space=sflag, size = 0x8, scoped, tag = 'scoped memory for tpu_custom_call.1']
    #allocation6 [shape = 'u8[98304]{0}', space=vmem, size = 0x18000, scoped, tag = 'input window, operand 3, single buffered']
    #allocation7 [shape = 's32[1]{0}', space=sflag, size = 0x4, scoped, tag = 'scoped memory for tpu_custom_call.1']
    #allocation8 [shape = 'u8[16384]{0}', space=vmem, size = 0x4000, scoped, tag = 'output window, operand 0']
    %10 = vsyncpa [#allocation4], 0
    %11 = vsyncpa [#allocation7], 0
    %12 = vsyncpa [#allocation5], 0
    %s13 = scalar_lea.sflag [#allocation5], 1
    %14 = vsyncpa %s13, 0
    loop: start=0, step=1, limit=4
    $region2: #{tpu_custom_call.1} parent=1 // loop_pre_header
      _
    $region3: #{tpu_custom_call.1} parent=1 // loop_header
      %s16 = sphi 0, %s20
      %p17 = scmp.ge.s32.totalorder %s16, 4
      %s26 = sphi 0, %s28
      %s29 = sphi 0, %s26
      %s30 = sphi 0, %s29
      %s46 = sphi 0, %s30
      %s50 = sphi 0, %s50
      %s52 = sphi 0, %s50
      %s53 = sphi 0, %s52
      %s67 = sphi 0, %s53
      %s71 = sphi 0, %s71
      %s73 = sphi 0, %s71
      %s74 = sphi 0, %s73
      %s88 = sphi 0, %s74
      %s92 = sphi 0, %s92
      %s94 = sphi 0, %s92
      %s95 = sphi 0, %s94
      %s109 = sphi 0, %s95
      %s113 = sphi 0, %s113
      %s115 = sphi 0, %s113
      %s116 = sphi 0, %s115
      %s130 = sphi 0, %s116
      %s136 = sphi 0, %s138
      %s139 = sphi 0, %s136
      %s140 = sphi 0, %s139
      %s156 = sphi 0, %s140
    $region4: #{tpu_custom_call.1} parent=1 // loop_header_branch
      %19 = sbr.rel (%p17) target = $region8
    $region5: #{tpu_custom_call.1} parent=1 // loop_body
      %s21 = ssub.s32 %s16, 1
      %s22 = ssub.s32 %s16, 2
      %s23 = sadd.s32 %s16, 1
      %s24 = ssub.s32 %s16, %s23
      %p25 = scmp.eq.s32.totalorder %s24, 0
      %s27 = sadd.s32 %s26, 1
      %s28 = scalar_select %p25, %s26, %s27
      %p31 = pneg %p25
      %p32 = scmp.eq.s32.totalorder %s16, 1
      %p33 = por %p31, %p32
      %p34 = scmp.ne.s32.totalorder %s26, %s29
      %p35 = scmp.eq.s32.totalorder %s16, 0
      %p36 = por %p34, %p35
      %p37 = scmp.ne.s32.totalorder %s26, %s29
      %p38 = scmp.eq.s32.totalorder %s21, 1
      %p39 = por %p37, %p38
      %p40 = scmp.ne.s32.totalorder %s29, %s30
      %p41 = scmp.eq.s32.totalorder %s21, 0
      %p42 = por %p40, %p41
      %p43 = scmp.ne.s32.totalorder %s29, %s30
      %p44 = scmp.eq.s32.totalorder %s22, 1
      %p45 = por %p43, %p44
      %p47 = scmp.ne.s32.totalorder %s30, %s46
      %p48 = scmp.eq.s32.totalorder %s22, 0
      %p49 = por %p47, %p48
      %s51 = sadd.s32 %s50, 1
      %p54 = scmp.eq.s32.totalorder %s16, 1
      %p55 = scmp.ne.s32.totalorder %s50, %s52
      %p56 = scmp.eq.s32.totalorder %s16, 0
      %p57 = por %p55, %p56
      %p58 = scmp.ne.s32.totalorder %s50, %s52
      %p59 = scmp.eq.s32.totalorder %s21, 1
      %p60 = por %p58, %p59
      %p61 = scmp.ne.s32.totalorder %s52, %s53
      %p62 = scmp.eq.s32.totalorder %s21, 0
      %p63 = por %p61, %p62
      %p64 = scmp.ne.s32.totalorder %s52, %s53
      %p65 = scmp.eq.s32.totalorder %s22, 1
      %p66 = por %p64, %p65
      %p68 = scmp.ne.s32.totalorder %s53, %s67
      %p69 = scmp.eq.s32.totalorder %s22, 0
      %p70 = por %p68, %p69
      %s72 = sadd.s32 %s71, 1
      %p75 = scmp.eq.s32.totalorder %s16, 1
      %p76 = scmp.ne.s32.totalorder %s71, %s73
      %p77 = scmp.eq.s32.totalorder %s16, 0
      %p78 = por %p76, %p77
      %p79 = scmp.ne.s32.totalorder %s71, %s73
      %p80 = scmp.eq.s32.totalorder %s21, 1
      %p81 = por %p79, %p80
      %p82 = scmp.ne.s32.totalorder %s73, %s74
      %p83 = scmp.eq.s32.totalorder %s21, 0
      %p84 = por %p82, %p83
      %p85 = scmp.ne.s32.totalorder %s73, %s74
      %p86 = scmp.eq.s32.totalorder %s22, 1
      %p87 = por %p85, %p86
      %p89 = scmp.ne.s32.totalorder %s74, %s88
      %p90 = scmp.eq.s32.totalorder %s22, 0
      %p91 = por %p89, %p90
      %s93 = sadd.s32 %s92, 1
      %p96 = scmp.eq.s32.totalorder %s16, 1
      %p97 = scmp.ne.s32.totalorder %s92, %s94
      %p98 = scmp.eq.s32.totalorder %s16, 0
      %p99 = por %p97, %p98
      %p100 = scmp.ne.s32.totalorder %s92, %s94
      %p101 = scmp.eq.s32.totalorder %s21, 1
      %p102 = por %p100, %p101
      %p103 = scmp.ne.s32.totalorder %s94, %s95
      %p104 = scmp.eq.s32.totalorder %s21, 0
      %p105 = por %p103, %p104
      %p106 = scmp.ne.s32.totalorder %s94, %s95
      %p107 = scmp.eq.s32.totalorder %s22, 1
      %p108 = por %p106, %p107
      %p110 = scmp.ne.s32.totalorder %s95, %s109
      %p111 = scmp.eq.s32.totalorder %s22, 0
      %p112 = por %p110, %p111
      %s114 = sadd.s32 %s113, 1
      %p117 = scmp.eq.s32.totalorder %s16, 1
      %p118 = scmp.ne.s32.totalorder %s113, %s115
      %p119 = scmp.eq.s32.totalorder %s16, 0
      %p120 = por %p118, %p119
      %p121 = scmp.ne.s32.totalorder %s113, %s115
      %p122 = scmp.eq.s32.totalorder %s21, 1
      %p123 = por %p121, %p122
      %p124 = scmp.ne.s32.totalorder %s115, %s116
      %p125 = scmp.eq.s32.totalorder %s21, 0
      %p126 = por %p124, %p125
      %p127 = scmp.ne.s32.totalorder %s115, %s116
      %p128 = scmp.eq.s32.totalorder %s22, 1
      %p129 = por %p127, %p128
      %p131 = scmp.ne.s32.totalorder %s116, %s130
      %p132 = scmp.eq.s32.totalorder %s22, 0
      %p133 = por %p131, %p132
      %s134 = ssub.s32 %s16, %s23
      %p135 = scmp.eq.s32.totalorder %s134, 0
      %s137 = sadd.s32 %s136, 1
      %s138 = scalar_select %p135, %s136, %s137
      %p141 = pneg %p135
      %p142 = scmp.eq.s32.totalorder %s16, 1
      %p143 = por %p141, %p142
      %p144 = scmp.ne.s32.totalorder %s136, %s139
      %p145 = scmp.eq.s32.totalorder %s16, 0
      %p146 = por %p144, %p145
      %p147 = scmp.ne.s32.totalorder %s136, %s139
      %p148 = scmp.eq.s32.totalorder %s21, 1
      %p149 = por %p147, %p148
      %p150 = scmp.ne.s32.totalorder %s139, %s140
      %p151 = scmp.eq.s32.totalorder %s21, 0
      %p152 = por %p150, %p151
      %p153 = scmp.ne.s32.totalorder %s139, %s140
      %p154 = scmp.eq.s32.totalorder %s22, 1
      %p155 = por %p153, %p154
      %p157 = scmp.ne.s32.totalorder %s140, %s156
      %p158 = scmp.eq.s32.totalorder %s22, 0
      %p159 = por %p157, %p158
      %p160 = scmp.le.s32.totalorder 1, %s16
      %p161 = scmp.lt.s32.totalorder %s16, 3
      %p162 = pnand %p160, %p161
      %p163 = pneg %p162
      // Predicated region
      $region9: #{tpu_custom_call.1} parent=5 // pred_check
        _
      $region10: #{tpu_custom_call.1} parent=5 // pred_check_branch
        %165 = sbr.rel (%p162) target = $region12
      $region11: #{tpu_custom_call.1} parent=5 // pred_region
        %s166 = ssub.s32 %s16, 1
        // Predicated region
        $region13: #{tpu_custom_call.1} parent=11 // pred_check
          %p167 = pneg %p63
        $region14: #{tpu_custom_call.1} parent=11 // pred_check_branch
          %169 = sbr.rel (%p167) target = $region16
        $region15: #{tpu_custom_call.1} parent=11 // pred_region
          %s171 = ssub.s32 3072, 3072
          %172 = vsyncadd [#allocation4], %s171
          %s173 = sshll.u32 [#allocation3], 4
          %s174 = int_to_ptr.vmem [resolvable:$true] %s173
          %179 = dma.hbm_to_vmem [thread:$0]  %s1, 3072, %s174, [#allocation4], 64, 64, 4
        $region16: #{tpu_custom_call.1} parent=11 // pred_fallthru
          _
        // Predicated region
        $region17: #{tpu_custom_call.1} parent=11 // pred_check
          %p180 = pneg %p84
        $region18: #{tpu_custom_call.1} parent=11 // pred_check_branch
          %182 = sbr.rel (%p180) target = $region20
        $region19: #{tpu_custom_call.1} parent=11 // pred_region
          _
        $region20: #{tpu_custom_call.1} parent=11 // pred_fallthru
          _
        // Predicated region
        $region21: #{tpu_custom_call.1} parent=11 // pred_check
          %p183 = pneg %p105
        $region22: #{tpu_custom_call.1} parent=11 // pred_check_branch
          %185 = sbr.rel (%p183) target = $region24
        $region23: #{tpu_custom_call.1} parent=11 // pred_region
          %s187 = ssub.s32 3072, 3072
          %188 = vsyncadd [#allocation7], %s187
          %s189 = sshll.u32 [#allocation6], 4
          %s190 = int_to_ptr.vmem [resolvable:$true] %s189
          %195 = dma.hbm_to_vmem [thread:$0]  %s3, 3072, %s190, [#allocation7], 64, 64, 4
        $region24: #{tpu_custom_call.1} parent=11 // pred_fallthru
          _
        // Predicated region
        $region25: #{tpu_custom_call.1} parent=11 // pred_check
          %p196 = pneg %p126
        $region26: #{tpu_custom_call.1} parent=11 // pred_check_branch
          %198 = sbr.rel (%p196) target = $region28
        $region27: #{tpu_custom_call.1} parent=11 // pred_region
          _
        $region28: #{tpu_custom_call.1} parent=11 // pred_fallthru
          _
      $region12: #{tpu_custom_call.1} parent=5 // pred_fallthru
        _
      %p199 = scmp.lt.s32.totalorder %s16, 2
      // Predicated region
      $region29: #{tpu_custom_call.1} parent=5 // pred_check
        %p200 = pneg %p199
      $region30: #{tpu_custom_call.1} parent=5 // pred_check_branch
        %202 = sbr.rel (%p200) target = $region32
      $region31: #{tpu_custom_call.1} parent=5 // pred_region
        // Predicated region
        $region33: #{tpu_custom_call.1} parent=31 // pred_check
          %p203 = pneg %p36
        $region34: #{tpu_custom_call.1} parent=31 // pred_check_branch
          %205 = sbr.rel (%p203) target = $region36
        $region35: #{tpu_custom_call.1} parent=31 // pred_region
          %p206 = scmp.lt.s32.totalorder %s16, 1
          %s207 = scalar_select %p206, %s16, 1
          %s208 = smul.addr %s207, 3
          %s209 = smul.addr %s208, 4
          %s210 = scalar_lea.vmem %s0, %s209
        $region36: #{tpu_custom_call.1} parent=31 // pred_fallthru
          _
      $region32: #{tpu_custom_call.1} parent=5 // pred_fallthru
        _
      %p211 = scmp.le.s32.totalorder 1, %s16
      %p212 = scmp.lt.s32.totalorder %s16, 3
      %p213 = pnand %p211, %p212
      %p214 = pneg %p213
      // Predicated region
      $region37: #{tpu_custom_call.1} parent=5 // pred_check
        _
      $region38: #{tpu_custom_call.1} parent=5 // pred_check_branch
        %216 = sbr.rel (%p213) target = $region40
      $region39: #{tpu_custom_call.1} parent=5 // pred_region
        %s217 = ssub.s32 %s16, 1
        // Predicated region
        $region41: #{tpu_custom_call.1} parent=39 // pred_check
          %p218 = pneg %p63
        $region42: #{tpu_custom_call.1} parent=39 // pred_check_branch
          %220 = sbr.rel (%p218) target = $region44
        $region43: #{tpu_custom_call.1} parent=39 // pred_region
          %221 = dma.done [#allocation4], 3072
        $region44: #{tpu_custom_call.1} parent=39 // pred_fallthru
          _
        // Predicated region
        $region45: #{tpu_custom_call.1} parent=39 // pred_check
          %p222 = pneg %p105
        $region46: #{tpu_custom_call.1} parent=39 // pred_check_branch
          %224 = sbr.rel (%p222) target = $region48
        $region47: #{tpu_custom_call.1} parent=39 // pred_region
          %225 = dma.done [#allocation7], 3072
        $region48: #{tpu_custom_call.1} parent=39 // pred_fallthru
          _
        %p226 = scmp.lt.s32.totalorder %s21, 1
        %s227 = scalar_select %p226, %s21, 1
        %s228 = smul.addr %s227, 3
        %s229 = smul.addr %s228, 4
        %s230 = scalar_lea.vmem %s0, %s229
        %p231 = pneg %p42
        %p232 = pneg %p39
        %p233 = pneg %p63
        %p234 = pneg %p60
        %p235 = pneg %p84
        %p236 = pneg %p81
        %p237 = pneg %p105
        %p238 = pneg %p102
        %p239 = pneg %p126
        %p240 = pneg %p123
        %p241 = pneg %p152
        %p242 = pneg %p149
        %s243 = sand.u32 %s139, 1
        %s244 = scalar_lea.sflag [#allocation5], %s243
        %s245 = sand.u32 %s139, 1
        %s246 = smul.addr %s245, 16
        %s247 = scalar_lea.vmem [#allocation8], %s246
        %p248 = scmp.lt.s32.totalorder %s21, 1
        %s249 = scalar_select %p248, %s21, 1
        %s250 = smul.addr %s249, 3
        %s251 = smul.addr %s250, 4
        %s252 = scalar_lea.vmem %s0, %s251
        %v254 = vld [vmem:[%s252] sm:$0xf]
        %v255 = vld [vmem:[%s252 + $0x4] sm:$0xf]
        %v256 = vld [vmem:[%s252 + $0x8] sm:$0x1]
        %v257 = vld [vmem:[%s252] sm:$0xe]
        %v258 = vld [vmem:[#allocation3] sm:$0xf]
        %v259 = vld [vmem:[#allocation3 + $0x4] sm:$0xf]
        %v260 = vld [vmem:[#allocation3 + $0x8] sm:$0xf]
        %v261 = vld [vmem:[#allocation3 + $0xc] sm:$0xf]
        %v262 = vld [vmem:[#allocation3 + $0x10] sm:$0xf]
        %v263 = vld [vmem:[#allocation3 + $0x14] sm:$0xf]
        %v264 = vld [vmem:[#allocation3 + $0x18] sm:$0xf]
        %v265 = vld [vmem:[#allocation3 + $0x1c] sm:$0xf]
        %v266 = vld [vmem:[#allocation3 + $0x20] sm:$0xf]
        %v267 = vld [vmem:[#allocation3 + $0x24] sm:$0xf]
        %v268 = vld [vmem:[#allocation3 + $0x28] sm:$0xf]
        %v269 = vld [vmem:[#allocation3 + $0x2c] sm:$0xf]
        %v270 = vld [vmem:[#allocation3 + $0x30] sm:$0xf]
        %v271 = vld [vmem:[#allocation3 + $0x34] sm:$0xf]
        %v272 = vld [vmem:[#allocation3 + $0x38] sm:$0xf]
        %v273 = vld [vmem:[#allocation3 + $0x3c] sm:$0xf]
        %s274 = scalar_lea.vmem [#allocation3], 64
        %v275 = vld [vmem:[%s274] sm:$0xf]
        %v276 = vld [vmem:[%s274 + $0x4] sm:$0xf]
        %v277 = vld [vmem:[%s274 + $0x8] sm:$0xf]
        %v278 = vld [vmem:[%s274 + $0xc] sm:$0xf]
        %v279 = vld [vmem:[%s274 + $0x10] sm:$0xf]
        %v280 = vld [vmem:[%s274 + $0x14] sm:$0xf]
        %v281 = vld [vmem:[%s274 + $0x18] sm:$0xf]
        %v282 = vld [vmem:[%s274 + $0x1c] sm:$0xf]
        %v283 = vld [vmem:[%s274 + $0x20] sm:$0xf]
        %v284 = vld [vmem:[%s274 + $0x24] sm:$0xf]
        %v285 = vld [vmem:[%s274 + $0x28] sm:$0xf]
        %v286 = vld [vmem:[%s274 + $0x2c] sm:$0xf]
        %v287 = vld [vmem:[%s274 + $0x30] sm:$0xf]
        %v288 = vld [vmem:[%s274 + $0x34] sm:$0xf]
        %v289 = vld [vmem:[%s274 + $0x38] sm:$0xf]
        %v290 = vld [vmem:[%s274 + $0x3c] sm:$0xf]
        %v294 = vunpack.c.l.b16 %v254
        %v295 = vunpack.c.l.b16 %v255
        %v296 = vunpack.c.l.b16 %v256
        %v297 = vpack.c.b16 %v295, %v294
        %v298 = vpack.c.b16 %v296, %v296
        %vm299 = vsmask.f32 7424
        %v301 = vshrl.u32 %v297, 16
        %v303 = vshll.u32 %v297, 16
        %v305 = vrot.slane %v303, 1
        %v306 = vor.u32 %v301, %v305
        %v308 = vshll.u32 %v298, 16
        %v310 = vrot.slane %v308, 1
        %v311 = vsel %vm299, %v306, %v310
        %v329 = vunpack.c.l.b16 %v275
        %v330 = vunpack.c.l.b16 %v276
        %v331 = vunpack.c.l.b16 %v277
        %v332 = vunpack.c.l.b16 %v278
        %v333 = vunpack.c.l.b16 %v279
        %v334 = vunpack.c.l.b16 %v280
        %v335 = vunpack.c.l.b16 %v281
        %v336 = vunpack.c.l.b16 %v282
        %v337 = vunpack.c.l.b16 %v283
        %v338 = vunpack.c.l.b16 %v284
        %v339 = vunpack.c.l.b16 %v285
        %v340 = vunpack.c.l.b16 %v286
        %v341 = vunpack.c.l.b16 %v287
        %v342 = vunpack.c.l.b16 %v288
        %v343 = vunpack.c.l.b16 %v289
        %v344 = vunpack.c.l.b16 %v290
        %v345 = vpack.c.b16 %v330, %v329
        %v346 = vpack.c.b16 %v332, %v331
        %v347 = vpack.c.b16 %v334, %v333
        %v348 = vpack.c.b16 %v336, %v335
        %v349 = vpack.c.b16 %v338, %v337
        %v350 = vpack.c.b16 %v340, %v339
        %v351 = vpack.c.b16 %v342, %v341
        %v352 = vpack.c.b16 %v344, %v343
        %361 = vmatprep.subr.bf16.mxu0 0
        %362 = vmatpush1.bf16.msra.mxu0 %v345
        %363 = vmatprep.subr.bf16.mxu0 0
        %364 = vmatpush1.bf16.msra.mxu0 %v346
        %365 = vmatprep.subr.bf16.mxu0 0
        %366 = vmatpush1.bf16.msra.mxu0 %v347
        %367 = vmatprep.subr.bf16.mxu0 0
        %368 = vmatpush1.bf16.msra.mxu0 %v348
        %369 = vmatprep.subr.bf16.mxu0 0
        %370 = vmatpush1.bf16.msra.mxu0 %v349
        %371 = vmatprep.subr.bf16.mxu0 0
        %372 = vmatpush1.bf16.msra.mxu0 %v350
        %373 = vmatprep.subr.bf16.mxu0 0
        %374 = vmatpush1.bf16.msra.mxu0 %v351
        %375 = vmatprep.subr.bf16.mxu0 0
        %376 = vmatpush1.bf16.msra.mxu0 %v352
        %377 = vmatprep.subr.bf16.mxu0 0
        %378 = vmatpush1.bf16.msra.mxu0 0
        %379 = vmatprep.subr.bf16.mxu0 0
        %380 = vmatpush1.bf16.msra.mxu0 0
        %381 = vmatprep.subr.bf16.mxu0 0
        %382 = vmatpush1.bf16.msra.mxu0 0
        %383 = vmatprep.subr.bf16.mxu0 0
        %384 = vmatpush1.bf16.msra.mxu0 0
        %385 = vmatprep.subr.bf16.mxu0 0
        %386 = vmatpush1.bf16.msra.mxu0 0
        %387 = vmatprep.subr.bf16.mxu0 0
        %388 = vmatpush1.bf16.msra.mxu0 0
        %389 = vmatprep.subr.bf16.mxu0 0
        %390 = vmatpush1.bf16.msra.mxu0 0
        %391 = vmatprep.subr.bf16.mxu0 0
        %392 = vmatpush1.bf16.msra.mxu0 0
        %393 = vmatprep.mubr.bf16.mxu0 0
        %394 = vmatmul.mubr.bf16.gmra.mrb[0].mxu0 %v311
        %v395 = vpop.f32.mrb[0].mxu0
        %v396 = vadd.f32 0.0, %v395
        %v397 = vpop.f32.mrb[0].mxu0
        %v398 = vpop.f32.mrb[0].mxu0
        %v399 = vadd.f32 0.0, %v398
        %v400 = vpop.f32.mrb[0].mxu0
        %401 = vdwg.mxu0
        %v419 = vunpack.c.l.b16 %v258
        %v420 = vunpack.c.l.b16 %v259
        %v421 = vunpack.c.l.b16 %v260
        %v422 = vunpack.c.l.b16 %v261
        %v423 = vunpack.c.l.b16 %v262
        %v424 = vunpack.c.l.b16 %v263
        %v425 = vunpack.c.l.b16 %v264
        %v426 = vunpack.c.l.b16 %v265
        %v427 = vunpack.c.l.b16 %v266
        %v428 = vunpack.c.l.b16 %v267
        %v429 = vunpack.c.l.b16 %v268
        %v430 = vunpack.c.l.b16 %v269
        %v431 = vunpack.c.l.b16 %v270
        %v432 = vunpack.c.l.b16 %v271
        %v433 = vunpack.c.l.b16 %v272
        %v434 = vunpack.c.l.b16 %v273
        %v435 = vpack.c.b16 %v420, %v419
        %v436 = vpack.c.b16 %v422, %v421
        %v437 = vpack.c.b16 %v424, %v423
        %v438 = vpack.c.b16 %v426, %v425
        %v439 = vpack.c.b16 %v428, %v427
        %v440 = vpack.c.b16 %v430, %v429
        %v441 = vpack.c.b16 %v432, %v431
        %v442 = vpack.c.b16 %v434, %v433
        %451 = vmatprep.subr.bf16.mxu0 0
        %452 = vmatpush1.bf16.msra.mxu0 %v435
        %453 = vmatprep.subr.bf16.mxu0 0
        %454 = vmatpush1.bf16.msra.mxu0 %v436
        %455 = vmatprep.subr.bf16.mxu0 0
        %456 = vmatpush1.bf16.msra.mxu0 %v437
        %457 = vmatprep.subr.bf16.mxu0 0
        %458 = vmatpush1.bf16.msra.mxu0 %v438
        %459 = vmatprep.subr.bf16.mxu0 0
        %460 = vmatpush1.bf16.msra.mxu0 %v439
        %461 = vmatprep.subr.bf16.mxu0 0
        %462 = vmatpush1.bf16.msra.mxu0 %v440
        %463 = vmatprep.subr.bf16.mxu0 0
        %464 = vmatpush1.bf16.msra.mxu0 %v441
        %465 = vmatprep.subr.bf16.mxu0 0
        %466 = vmatpush1.bf16.msra.mxu0 %v442
        %467 = vmatprep.subr.bf16.mxu0 0
        %468 = vmatpush1.bf16.msra.mxu0 0
        %469 = vmatprep.subr.bf16.mxu0 0
        %470 = vmatpush1.bf16.msra.mxu0 0
        %471 = vmatprep.subr.bf16.mxu0 0
        %472 = vmatpush1.bf16.msra.mxu0 0
        %473 = vmatprep.subr.bf16.mxu0 0
        %474 = vmatpush1.bf16.msra.mxu0 0
        %475 = vmatprep.subr.bf16.mxu0 0
        %476 = vmatpush1.bf16.msra.mxu0 0
        %477 = vmatprep.subr.bf16.mxu0 0
        %478 = vmatpush1.bf16.msra.mxu0 0
        %479 = vmatprep.subr.bf16.mxu0 0
        %480 = vmatpush1.bf16.msra.mxu0 0
        %481 = vmatprep.subr.bf16.mxu0 0
        %482 = vmatpush1.bf16.msra.mxu0 0
        %483 = vmatprep.mubr.bf16.mxu0 0
        %484 = vmatmul.mubr.bf16.gmra.mrb[0].mxu0 %v297
        %v485 = vpop.f32.mrb[0].mxu0
        %v486 = vadd.f32 %v396, %v485
        %v487 = vpop.f32.mrb[0].mxu0
        %v488 = vpop.f32.mrb[0].mxu0
        %v489 = vadd.f32 %v399, %v488
        %v490 = vpop.f32.mrb[0].mxu0
        %491 = vdwg.mxu0
        %s492 = scalar_lea.vmem [#allocation3], 128
        %v493 = vld [vmem:[%s492] sm:$0xf]
        %v494 = vld [vmem:[%s492 + $0x4] sm:$0xf]
        %v495 = vld [vmem:[%s492 + $0x8] sm:$0xf]
        %v496 = vld [vmem:[%s492 + $0xc] sm:$0xf]
        %v497 = vld [vmem:[%s492 + $0x10] sm:$0xf]
        %v498 = vld [vmem:[%s492 + $0x14] sm:$0xf]
        %v499 = vld [vmem:[%s492 + $0x18] sm:$0xf]
        %v500 = vld [vmem:[%s492 + $0x1c] sm:$0xf]
        %v501 = vld [vmem:[%s492 + $0x20] sm:$0xf]
        %v502 = vld [vmem:[%s492 + $0x24] sm:$0xf]
        %v503 = vld [vmem:[%s492 + $0x28] sm:$0xf]
        %v504 = vld [vmem:[%s492 + $0x2c] sm:$0xf]
        %v505 = vld [vmem:[%s492 + $0x30] sm:$0xf]
        %v506 = vld [vmem:[%s492 + $0x34] sm:$0xf]
        %v507 = vld [vmem:[%s492 + $0x38] sm:$0xf]
        %v508 = vld [vmem:[%s492 + $0x3c] sm:$0xf]
        %v510 = vunpack.c.l.b16 %v257
        %v511 = vpack.c.b16 %v295, %v510
        %vm512 = vcmask 1046528
        %v513 = vrot.slane %v511, 1
        %v514 = vrot.slane %v298, 1
        %v515 = vsel %vm512, %v513, %v514
        %v533 = vunpack.c.l.b16 %v493
        %v534 = vunpack.c.l.b16 %v494
        %v535 = vunpack.c.l.b16 %v495
        %v536 = vunpack.c.l.b16 %v496
        %v537 = vunpack.c.l.b16 %v497
        %v538 = vunpack.c.l.b16 %v498
        %v539 = vunpack.c.l.b16 %v499
        %v540 = vunpack.c.l.b16 %v500
        %v541 = vunpack.c.l.b16 %v501
        %v542 = vunpack.c.l.b16 %v502
        %v543 = vunpack.c.l.b16 %v503
        %v544 = vunpack.c.l.b16 %v504
        %v545 = vunpack.c.l.b16 %v505
        %v546 = vunpack.c.l.b16 %v506
        %v547 = vunpack.c.l.b16 %v507
        %v548 = vunpack.c.l.b16 %v508
        %v549 = vpack.c.b16 %v534, %v533
        %v550 = vpack.c.b16 %v536, %v535
        %v551 = vpack.c.b16 %v538, %v537
        %v552 = vpack.c.b16 %v540, %v539
        %v553 = vpack.c.b16 %v542, %v541
        %v554 = vpack.c.b16 %v544, %v543
        %v555 = vpack.c.b16 %v546, %v545
        %v556 = vpack.c.b16 %v548, %v547
        %565 = vmatprep.subr.bf16.mxu0 0
        %566 = vmatpush1.bf16.msra.mxu0 %v549
        %567 = vmatprep.subr.bf16.mxu0 0
        %568 = vmatpush1.bf16.msra.mxu0 %v550
        %569 = vmatprep.subr.bf16.mxu0 0
        %570 = vmatpush1.bf16.msra.mxu0 %v551
        %571 = vmatprep.subr.bf16.mxu0 0
        %572 = vmatpush1.bf16.msra.mxu0 %v552
        %573 = vmatprep.subr.bf16.mxu0 0
        %574 = vmatpush1.bf16.msra.mxu0 %v553
        %575 = vmatprep.subr.bf16.mxu0 0
        %576 = vmatpush1.bf16.msra.mxu0 %v554
        %577 = vmatprep.subr.bf16.mxu0 0
        %578 = vmatpush1.bf16.msra.mxu0 %v555
        %579 = vmatprep.subr.bf16.mxu0 0
        %580 = vmatpush1.bf16.msra.mxu0 %v556
        %581 = vmatprep.subr.bf16.mxu0 0
        %582 = vmatpush1.bf16.msra.mxu0 0
        %583 = vmatprep.subr.bf16.mxu0 0
        %584 = vmatpush1.bf16.msra.mxu0 0
        %585 = vmatprep.subr.bf16.mxu0 0
        %586 = vmatpush1.bf16.msra.mxu0 0
        %587 = vmatprep.subr.bf16.mxu0 0
        %588 = vmatpush1.bf16.msra.mxu0 0
        %589 = vmatprep.subr.bf16.mxu0 0
        %590 = vmatpush1.bf16.msra.mxu0 0
        %591 = vmatprep.subr.bf16.mxu0 0
        %592 = vmatpush1.bf16.msra.mxu0 0
        %593 = vmatprep.subr.bf16.mxu0 0
        %594 = vmatpush1.bf16.msra.mxu0 0
        %595 = vmatprep.subr.bf16.mxu0 0
        %596 = vmatpush1.bf16.msra.mxu0 0
        %597 = vmatprep.mubr.bf16.mxu0 0
        %598 = vmatmul.mubr.bf16.gmra.mrb[0].mxu0 %v515
        %v599 = vpop.f32.mrb[0].mxu0
        %v600 = vadd.f32 0.0, %v599
        %v601 = vpop.f32.mrb[0].mxu0
        %v602 = vpop.f32.mrb[0].mxu0
        %v603 = vadd.f32 0.0, %v602
        %v604 = vpop.f32.mrb[0].mxu0
        %605 = vdwg.mxu0
        %v606 = vadd.f32 %v486, %v600
        %v607 = vadd.f32 %v489, %v603
        %v608 = vld [vmem:[%s2] sm:$0x1]
        %v610 = vlaneseq
        %v611 = vshrl.u32 %v610, 7
        %v612 = vsub.s32 0, %v611
        %v613 = vrot.slane %v608, %v612
        %v615 = vadd.f32 %v606, %v613
        %v616 = vadd.f32 %v607, %v613
        %v617 = vmax.f32 %v615, 0.0
        %v618 = vmax.f32 %v616, 0.0
        %v619 = vpack.c.bf16 %v618, %v617
        %vm620 = vcmask 1040384
        %vm621 = vsmask.f32 256
        %vm622 = vmand %vm620, %vm621
        %v623 = vld [vmem:[#allocation2] sm:$0x1]
        %v624 = vsel %vm622, 0, %v623
        %625 = vst [vmem:[#allocation2] sm:$0x1] %v624
        %vm626 = vsmask.f32 7938
        %vm627 = vmand %vm620, %vm626
        %v628 = vld [vmem:[#allocation2 + $0x8] sm:$0x1]
        %v629 = vsel %vm627, 0, %v628
        %630 = vst [vmem:[#allocation2 + $0x8] sm:$0x1] %v629
        %v632 = vunpack.c.l.b16 %v619
        %v633 = vunpack.c.h.b16 %v619
        %v634 = vpack.c.b16 %v632, %v632
        %v635 = vpack.c.b16 %v633, %v633
        %vm636 = vsmask.f32 4368
        %vm637 = vmor %vm621, %vm636
        %v639 = vshrl.u32 %v634, 16
        %v641 = vrot.slane %v639, 7
        %v642 = vshll.u32 %v634, 16
        %v644 = vor.u32 %v641, %v642
        %v645 = vrot.slane %v641, 4
        %v647 = vshrl.u32 %v635, 16
        %v649 = vrot.slane %v647, 7
        %v650 = vshll.u32 %v635, 16
        %v652 = vor.u32 %v649, %v650
        %v653 = vsel %vm637, %v645, %v652
        %v654 = vrot.slane %v649, 4
        %vm658 = vcmask 1043456
        %vm659 = vmand %vm658, %vm626
        %v660 = vld [vmem:[#allocation2] sm:$0xf]
        %v661 = vsel %vm659, %v644, %v660
        %662 = vst [vmem:[#allocation2] sm:$0xf] %v661
        %663 = vst [vmem:[#allocation2 + $0x4] sm:$0xf] %v653
        %v664 = vld [vmem:[#allocation2 + $0x8] sm:$0x1]
        %v665 = vsel %vm622, %v654, %v664
        %666 = vst [vmem:[#allocation2 + $0x8] sm:$0x1] %v665
        %s667 = scalar_lea.vmem [#allocation6], 64
        %v668 = vld [vmem:[%s667] sm:$0xf]
        %v669 = vld [vmem:[%s667 + $0x4] sm:$0xf]
        %v670 = vld [vmem:[%s667 + $0x8] sm:$0xf]
        %v671 = vld [vmem:[%s667 + $0xc] sm:$0xf]
        %v672 = vld [vmem:[%s667 + $0x10] sm:$0xf]
        %v673 = vld [vmem:[%s667 + $0x14] sm:$0xf]
        %v674 = vld [vmem:[%s667 + $0x18] sm:$0xf]
        %v675 = vld [vmem:[%s667 + $0x1c] sm:$0xf]
        %v676 = vld [vmem:[%s667 + $0x20] sm:$0xf]
        %v677 = vld [vmem:[%s667 + $0x24] sm:$0xf]
        %v678 = vld [vmem:[%s667 + $0x28] sm:$0xf]
        %v679 = vld [vmem:[%s667 + $0x2c] sm:$0xf]
        %v680 = vld [vmem:[%s667 + $0x30] sm:$0xf]
        %v681 = vld [vmem:[%s667 + $0x34] sm:$0xf]
        %v682 = vld [vmem:[%s667 + $0x38] sm:$0xf]
        %v683 = vld [vmem:[%s667 + $0x3c] sm:$0xf]
        %v684 = vld [vmem:[#allocation2] sm:$0xf]
        %v685 = vld [vmem:[#allocation2 + $0x4] sm:$0xf]
        %v686 = vld [vmem:[#allocation6] sm:$0xf]
        %v687 = vld [vmem:[#allocation6 + $0x4] sm:$0xf]
        %v688 = vld [vmem:[#allocation6 + $0x8] sm:$0xf]
        %v689 = vld [vmem:[#allocation6 + $0xc] sm:$0xf]
        %v690 = vld [vmem:[#allocation6 + $0x10] sm:$0xf]
        %v691 = vld [vmem:[#allocation6 + $0x14] sm:$0xf]
        %v692 = vld [vmem:[#allocation6 + $0x18] sm:$0xf]
        %v693 = vld [vmem:[#allocation6 + $0x1c] sm:$0xf]
        %v694 = vld [vmem:[#allocation6 + $0x20] sm:$0xf]
        %v695 = vld [vmem:[#allocation6 + $0x24] sm:$0xf]
        %v696 = vld [vmem:[#allocation6 + $0x28] sm:$0xf]
        %v697 = vld [vmem:[#allocation6 + $0x2c] sm:$0xf]
        %v698 = vld [vmem:[#allocation6 + $0x30] sm:$0xf]
        %v699 = vld [vmem:[#allocation6 + $0x34] sm:$0xf]
        %v700 = vld [vmem:[#allocation6 + $0x38] sm:$0xf]
        %v701 = vld [vmem:[#allocation6 + $0x3c] sm:$0xf]
        %v704 = vunpack.c.l.b16 %v684
        %v705 = vunpack.c.l.b16 %v685
        %v706 = vpack.c.b16 %v705, %v704
        %v724 = vunpack.c.l.b16 %v686
        %v725 = vunpack.c.l.b16 %v687
        %v726 = vunpack.c.l.b16 %v688
        %v727 = vunpack.c.l.b16 %v689
        %v728 = vunpack.c.l.b16 %v690
        %v729 = vunpack.c.l.b16 %v691
        %v730 = vunpack.c.l.b16 %v692
        %v731 = vunpack.c.l.b16 %v693
        %v732 = vunpack.c.l.b16 %v694
        %v733 = vunpack.c.l.b16 %v695
        %v734 = vunpack.c.l.b16 %v696
        %v735 = vunpack.c.l.b16 %v697
        %v736 = vunpack.c.l.b16 %v698
        %v737 = vunpack.c.l.b16 %v699
        %v738 = vunpack.c.l.b16 %v700
        %v739 = vunpack.c.l.b16 %v701
        %v740 = vpack.c.b16 %v725, %v724
        %v741 = vpack.c.b16 %v727, %v726
        %v742 = vpack.c.b16 %v729, %v728
        %v743 = vpack.c.b16 %v731, %v730
        %v744 = vpack.c.b16 %v733, %v732
        %v745 = vpack.c.b16 %v735, %v734
        %v746 = vpack.c.b16 %v737, %v736
        %v747 = vpack.c.b16 %v739, %v738
        %756 = vmatprep.subr.bf16.mxu0 0
        %757 = vmatpush1.bf16.msra.mxu0 %v740
        %758 = vmatprep.subr.bf16.mxu0 0
        %759 = vmatpush1.bf16.msra.mxu0 %v741
        %760 = vmatprep.subr.bf16.mxu0 0
        %761 = vmatpush1.bf16.msra.mxu0 %v742
        %762 = vmatprep.subr.bf16.mxu0 0
        %763 = vmatpush1.bf16.msra.mxu0 %v743
        %764 = vmatprep.subr.bf16.mxu0 0
        %765 = vmatpush1.bf16.msra.mxu0 %v744
        %766 = vmatprep.subr.bf16.mxu0 0
        %767 = vmatpush1.bf16.msra.mxu0 %v745
        %768 = vmatprep.subr.bf16.mxu0 0
        %769 = vmatpush1.bf16.msra.mxu0 %v746
        %770 = vmatprep.subr.bf16.mxu0 0
        %771 = vmatpush1.bf16.msra.mxu0 %v747
        %772 = vmatprep.subr.bf16.mxu0 0
        %773 = vmatpush1.bf16.msra.mxu0 0
        %774 = vmatprep.subr.bf16.mxu0 0
        %775 = vmatpush1.bf16.msra.mxu0 0
        %776 = vmatprep.subr.bf16.mxu0 0
        %777 = vmatpush1.bf16.msra.mxu0 0
        %778 = vmatprep.subr.bf16.mxu0 0
        %779 = vmatpush1.bf16.msra.mxu0 0
        %780 = vmatprep.subr.bf16.mxu0 0
        %781 = vmatpush1.bf16.msra.mxu0 0
        %782 = vmatprep.subr.bf16.mxu0 0
        %783 = vmatpush1.bf16.msra.mxu0 0
        %784 = vmatprep.subr.bf16.mxu0 0
        %785 = vmatpush1.bf16.msra.mxu0 0
        %786 = vmatprep.subr.bf16.mxu0 0
        %787 = vmatpush1.bf16.msra.mxu0 0
        %788 = vmatprep.mubr.bf16.mxu0 0
        %789 = vmatmul.mubr.bf16.gmra.mrb[0].mxu0 %v706
        %v790 = vpop.f32.mrb[0].mxu0
        %v791 = vadd.f32 0.0, %v790
        %v792 = vpop.f32.mrb[0].mxu0
        %v793 = vpop.f32.mrb[0].mxu0
        %v794 = vadd.f32 0.0, %v793
        %v795 = vpop.f32.mrb[0].mxu0
        %796 = vdwg.mxu0
        %v813 = vunpack.c.l.b16 %v668
        %v814 = vunpack.c.l.b16 %v669
        %v815 = vunpack.c.l.b16 %v670
        %v816 = vunpack.c.l.b16 %v671
        %v817 = vunpack.c.l.b16 %v672
        %v818 = vunpack.c.l.b16 %v673
        %v819 = vunpack.c.l.b16 %v674
        %v820 = vunpack.c.l.b16 %v675
        %v821 = vunpack.c.l.b16 %v676
        %v822 = vunpack.c.l.b16 %v677
        %v823 = vunpack.c.l.b16 %v678
        %v824 = vunpack.c.l.b16 %v679
        %v825 = vunpack.c.l.b16 %v680
        %v826 = vunpack.c.l.b16 %v681
        %v827 = vunpack.c.l.b16 %v682
        %v828 = vunpack.c.l.b16 %v683
        %v829 = vpack.c.b16 %v814, %v813
        %v830 = vpack.c.b16 %v816, %v815
        %v831 = vpack.c.b16 %v818, %v817
        %v832 = vpack.c.b16 %v820, %v819
        %v833 = vpack.c.b16 %v822, %v821
        %v834 = vpack.c.b16 %v824, %v823
        %v835 = vpack.c.b16 %v826, %v825
        %v836 = vpack.c.b16 %v828, %v827
        %845 = vmatprep.subr.bf16.mxu0 0
        %846 = vmatpush1.bf16.msra.mxu0 %v829
        %847 = vmatprep.subr.bf16.mxu0 0
        %848 = vmatpush1.bf16.msra.mxu0 %v830
        %849 = vmatprep.subr.bf16.mxu0 0
        %850 = vmatpush1.bf16.msra.mxu0 %v831
        %851 = vmatprep.subr.bf16.mxu0 0
        %852 = vmatpush1.bf16.msra.mxu0 %v832
        %853 = vmatprep.subr.bf16.mxu0 0
        %854 = vmatpush1.bf16.msra.mxu0 %v833
        %855 = vmatprep.subr.bf16.mxu0 0
        %856 = vmatpush1.bf16.msra.mxu0 %v834
        %857 = vmatprep.subr.bf16.mxu0 0
        %858 = vmatpush1.bf16.msra.mxu0 %v835
        %859 = vmatprep.subr.bf16.mxu0 0
        %860 = vmatpush1.bf16.msra.mxu0 %v836
        %861 = vmatprep.subr.bf16.mxu0 0
        %862 = vmatpush1.bf16.msra.mxu0 0
        %863 = vmatprep.subr.bf16.mxu0 0
        %864 = vmatpush1.bf16.msra.mxu0 0
        %865 = vmatprep.subr.bf16.mxu0 0
        %866 = vmatpush1.bf16.msra.mxu0 0
        %867 = vmatprep.subr.bf16.mxu0 0
        %868 = vmatpush1.bf16.msra.mxu0 0
        %869 = vmatprep.subr.bf16.mxu0 0
        %870 = vmatpush1.bf16.msra.mxu0 0
        %871 = vmatprep.subr.bf16.mxu0 0
        %872 = vmatpush1.bf16.msra.mxu0 0
        %873 = vmatprep.subr.bf16.mxu0 0
        %874 = vmatpush1.bf16.msra.mxu0 0
        %875 = vmatprep.subr.bf16.mxu0 0
        %876 = vmatpush1.bf16.msra.mxu0 0
        %877 = vmatprep.mubr.bf16.mxu0 0
        %878 = vmatmul.mubr.bf16.gmra.mrb[0].mxu0 %v619
        %v879 = vpop.f32.mrb[0].mxu0
        %v880 = vadd.f32 %v791, %v879
        %v881 = vpop.f32.mrb[0].mxu0
        %v882 = vpop.f32.mrb[0].mxu0
        %v883 = vadd.f32 %v794, %v882
        %v884 = vpop.f32.mrb[0].mxu0
        %885 = vdwg.mxu0
        %v886 = vld [vmem:[#allocation2] sm:$0xe]
        %v887 = vld [vmem:[#allocation2 + $0x4] sm:$0xf]
        %v888 = vld [vmem:[#allocation2 + $0x8] sm:$0x1]
        %s889 = scalar_lea.vmem [#allocation6], 128
        %v890 = vld [vmem:[%s889] sm:$0xf]
        %v891 = vld [vmem:[%s889 + $0x4] sm:$0xf]
        %v892 = vld [vmem:[%s889 + $0x8] sm:$0xf]
        %v893 = vld [vmem:[%s889 + $0xc] sm:$0xf]
        %v894 = vld [vmem:[%s889 + $0x10] sm:$0xf]
        %v895 = vld [vmem:[%s889 + $0x14] sm:$0xf]
        %v896 = vld [vmem:[%s889 + $0x18] sm:$0xf]
        %v897 = vld [vmem:[%s889 + $0x1c] sm:$0xf]
        %v898 = vld [vmem:[%s889 + $0x20] sm:$0xf]
        %v899 = vld [vmem:[%s889 + $0x24] sm:$0xf]
        %v900 = vld [vmem:[%s889 + $0x28] sm:$0xf]
        %v901 = vld [vmem:[%s889 + $0x2c] sm:$0xf]
        %v902 = vld [vmem:[%s889 + $0x30] sm:$0xf]
        %v903 = vld [vmem:[%s889 + $0x34] sm:$0xf]
        %v904 = vld [vmem:[%s889 + $0x38] sm:$0xf]
        %v905 = vld [vmem:[%s889 + $0x3c] sm:$0xf]
        %v909 = vunpack.c.l.b16 %v886
        %v910 = vunpack.c.l.b16 %v887
        %v911 = vunpack.c.l.b16 %v888
        %v912 = vpack.c.b16 %v910, %v909
        %v913 = vpack.c.b16 %v911, %v911
        %v914 = vrot.slane %v912, 1
        %v915 = vrot.slane %v913, 1
        %v916 = vsel %vm512, %v914, %v915
        %v934 = vunpack.c.l.b16 %v890
        %v935 = vunpack.c.l.b16 %v891
        %v936 = vunpack.c.l.b16 %v892
        %v937 = vunpack.c.l.b16 %v893
        %v938 = vunpack.c.l.b16 %v894
        %v939 = vunpack.c.l.b16 %v895
        %v940 = vunpack.c.l.b16 %v896
        %v941 = vunpack.c.l.b16 %v897
        %v942 = vunpack.c.l.b16 %v898
        %v943 = vunpack.c.l.b16 %v899
        %v944 = vunpack.c.l.b16 %v900
        %v945 = vunpack.c.l.b16 %v901
        %v946 = vunpack.c.l.b16 %v902
        %v947 = vunpack.c.l.b16 %v903
        %v948 = vunpack.c.l.b16 %v904
        %v949 = vunpack.c.l.b16 %v905
        %v950 = vpack.c.b16 %v935, %v934
        %v951 = vpack.c.b16 %v937, %v936
        %v952 = vpack.c.b16 %v939, %v938
        %v953 = vpack.c.b16 %v941, %v940
        %v954 = vpack.c.b16 %v943, %v942
        %v955 = vpack.c.b16 %v945, %v944
        %v956 = vpack.c.b16 %v947, %v946
        %v957 = vpack.c.b16 %v949, %v948
        %966 = vmatprep.subr.bf16.mxu0 0
        %967 = vmatpush1.bf16.msra.mxu0 %v950
        %968 = vmatprep.subr.bf16.mxu0 0
        %969 = vmatpush1.bf16.msra.mxu0 %v951
        %970 = vmatprep.subr.bf16.mxu0 0
        %971 = vmatpush1.bf16.msra.mxu0 %v952
        %972 = vmatprep.subr.bf16.mxu0 0
        %973 = vmatpush1.bf16.msra.mxu0 %v953
        %974 = vmatprep.subr.bf16.mxu0 0
        %975 = vmatpush1.bf16.msra.mxu0 %v954
        %976 = vmatprep.subr.bf16.mxu0 0
        %977 = vmatpush1.bf16.msra.mxu0 %v955
        %978 = vmatprep.subr.bf16.mxu0 0
        %979 = vmatpush1.bf16.msra.mxu0 %v956
        %980 = vmatprep.subr.bf16.mxu0 0
        %981 = vmatpush1.bf16.msra.mxu0 %v957
        %982 = vmatprep.subr.bf16.mxu0 0
        %983 = vmatpush1.bf16.msra.mxu0 0
        %984 = vmatprep.subr.bf16.mxu0 0
        %985 = vmatpush1.bf16.msra.mxu0 0
        %986 = vmatprep.subr.bf16.mxu0 0
        %987 = vmatpush1.bf16.msra.mxu0 0
        %988 = vmatprep.subr.bf16.mxu0 0
        %989 = vmatpush1.bf16.msra.mxu0 0
        %990 = vmatprep.subr.bf16.mxu0 0
        %991 = vmatpush1.bf16.msra.mxu0 0
        %992 = vmatprep.subr.bf16.mxu0 0
        %993 = vmatpush1.bf16.msra.mxu0 0
        %994 = vmatprep.subr.bf16.mxu0 0
        %995 = vmatpush1.bf16.msra.mxu0 0
        %996 = vmatprep.subr.bf16.mxu0 0
        %997 = vmatpush1.bf16.msra.mxu0 0
        %998 = vmatprep.mubr.bf16.mxu0 0
        %999 = vmatmul.mubr.bf16.gmra.mrb[0].mxu0 %v916
        %v1000 = vpop.f32.mrb[0].mxu0
        %v1001 = vadd.f32 0.0, %v1000
        %v1002 = vpop.f32.mrb[0].mxu0
        %v1003 = vpop.f32.mrb[0].mxu0
        %v1004 = vadd.f32 0.0, %v1003
        %v1005 = vpop.f32.mrb[0].mxu0
        %1006 = vdwg.mxu0
        %v1007 = vadd.f32 %v880, %v1001
        %v1008 = vadd.f32 %v883, %v1004
        %v1009 = vld [vmem:[%s4] sm:$0x1]
        %v1011 = vlaneseq
        %v1012 = vshrl.u32 %v1011, 7
        %v1013 = vsub.s32 0, %v1012
        %v1014 = vrot.slane %v1009, %v1013
        %v1016 = vadd.f32 %v1007, %v1014
        %v1017 = vadd.f32 %v1008, %v1014
        %v1018 = vunpack.c.l.bf16 %v254
        %v1019 = vunpack.c.l.bf16 %v255
        %v1020 = vunpack.c.l.bf16 %v256
        %vm1024 = vcmask 1046528
        %v1025 = vrot.slane %v1018, 1
        %v1026 = vrot.slane %v1019, 1
        %v1027 = vsel %vm1024, %v1025, %v1026
        %v1028 = vrot.slane %v1020, 1
        %v1029 = vsel %vm1024, %v1026, %v1028
        %v1032 = vadd.f32 %v1016, %v1027
        %v1033 = vadd.f32 %v1017, %v1029
        %v1034 = vmax.f32 %v1032, 0.0
        %v1035 = vmax.f32 %v1033, 0.0
        %1036 = vst [vmem:[%s247] sm:$0xff] %v1034
        %1037 = vst [vmem:[%s247 + $0x8] sm:$0xff] %v1035
        %s1038 = sand.u32 %s139, 1
        %s1039 = scalar_lea.sflag [#allocation5], %s1038
        %s1040 = sand.u32 %s139, 1
        %s1041 = smul.addr %s1040, 16
        %s1042 = scalar_lea.vmem [#allocation8], %s1041
        // Predicated region
        $region49: #{tpu_custom_call.1} parent=39 // pred_check
          %p1043 = pneg %p149
        $region50: #{tpu_custom_call.1} parent=39 // pred_check_branch
          %1045 = sbr.rel (%p1043) target = $region52
        $region51: #{tpu_custom_call.1} parent=39 // pred_region
          %s1047 = ssub.s32 256, 256
          %1048 = vsyncadd %s1039, %s1047
          %s1049 = smul.addr %s21, 2
          %s1050 = smul.addr %s1049, 128
          %s1051 = scalar_lea.hbm %s5, %s1050
          %s1052 = sshll.u32 %s1042, 4
          %s1053 = int_to_ptr.vmem [resolvable:$true] %s1052
          %1058 = dma.vmem_to_hbm [thread:$0]  %s1053, 256, %s1051, %s1039, 128, 128, 8
        $region52: #{tpu_custom_call.1} parent=39 // pred_fallthru
          _
      $region40: #{tpu_custom_call.1} parent=5 // pred_fallthru
        _
      %p1059 = scmp.le.s32.totalorder 2, %s16
      // Predicated region
      $region53: #{tpu_custom_call.1} parent=5 // pred_check
        %p1060 = pneg %p1059
      $region54: #{tpu_custom_call.1} parent=5 // pred_check_branch
        %1062 = sbr.rel (%p1060) target = $region56
      $region55: #{tpu_custom_call.1} parent=5 // pred_region
        %s1063 = ssub.s32 %s16, 2
        // Predicated region
        $region57: #{tpu_custom_call.1} parent=55 // pred_check
          %p1064 = pneg %p155
        $region58: #{tpu_custom_call.1} parent=55 // pred_check_branch
          %1066 = sbr.rel (%p1064) target = $region60
        $region59: #{tpu_custom_call.1} parent=55 // pred_region
          %s1067 = sand.u32 %s140, 1
          %s1068 = scalar_lea.sflag [#allocation5], %s1067
          %s1069 = sand.u32 %s140, 1
          %s1070 = smul.addr %s1069, 16
          %s1071 = scalar_lea.vmem [#allocation8], %s1070
          %1072 = dma.done %s1068, 256
        $region60: #{tpu_custom_call.1} parent=55 // pred_fallthru
          _
      $region56: #{tpu_custom_call.1} parent=5 // pred_fallthru
        _
    $region6: #{tpu_custom_call.1} parent=1 // loop_footer
      %s20 = sadd.s32 1, %s16
    $region7: #{tpu_custom_call.1} parent=1 // loop_footer_branch
      %15 = sbr.rel target = $region3
    $region8: #{tpu_custom_call.1} parent=1 // loop_exit
      _
    %1073 = vsyncpa [#allocation4], 1
    %s1074 = scalar_lea.sflag [#allocation4], 1
    %1075 = vsyncpa %s1074, 1
    %1076 = vsyncpa [#allocation7], 1
    %1077 = vsyncpa [#allocation5], 1
    %s1078 = scalar_lea.sflag [#allocation5], 1
    %1079 = vsyncpa %s1078, 1

</llo_original>
